<compile_context>
chip_gen: v5e
topology: v5e:2x2
jax: 0.10.0
libtpu: 0.0.40
codegen_flags: <defaults>
</compile_context>

<pallas_src>
import functools

import jax
import jax.numpy as jnp
from jax.experimental import pallas as pl
from jax.experimental.pallas import tpu as pltpu

LANE = 128            # minimum lane-dense feature padding
LANE_WIDE = 256       # v6e/v7x MXU-native tile once a feature dim exceeds 128
BF16_SUBLANE = 16     # bf16 operands pack 16 rows per vreg
MAX_BATCH_TILE = 512  # batch rows per grid step when batch is large


def _round_up(n, m):
    return ((n + m - 1) // m) * m


def _pad_feature(d):
    # <=128 -> 128 (already saturates v5e's 128-wide MXU);
    # >128  -> multiple of 256 (2x256^2 MXUs on v6e/v7x).
    return LANE if d <= LANE else _round_up(d, LANE_WIDE)


# ----------------------------------------------------------------------------
# Fused Pallas kernel: whole Seq chain in one call
# ----------------------------------------------------------------------------
def _seq_fused_kernel(n_layers, n_classes, d_pads, x_ref, *refs):
    """refs = (w0, w1, ..., w_{L-1}, bias_all, o_ref).

    x:        (bm, D0p)           bf16
    w_i:      (D{i}p, D{i+1}p)    bf16   (VMEM-resident, single-buffered)
    bias_all: (n_layers, maxDp)   f32    (VMEM-resident, single-buffered)
    o:        (bm, DLp)           bf16   (softmax over first n_classes lanes)
    """
    bias_ref = refs[n_layers]
    o_ref = refs[n_layers + 1]

    h = x_ref[...]  # bf16 activations (MXU-native input dtype)
    for layer in range(n_layers):
        dp_out = d_pads[layer + 1]
        w = refs[layer][...]                                         # bf16
        b = bias_ref[layer:layer + 1, :dp_out].astype(jnp.float32)   # (1, dp_out) f32
        acc = jnp.dot(h, w, preferred_element_type=jnp.float32) + b  # f32 accumulator

        if layer < n_layers - 1:
            # `model.forward(x)` : Linear + ReLU (never leaves VMEM/vregs)
            h = jnp.maximum(acc, 0.0).astype(jnp.bfloat16)
        else:
            # `model.inference(x)` : Linear + softmax (f32 elementwise; v5e has
            # no bf16 VPU/EUP).  Padded class lanes -> -inf so they drop out.
            if n_classes < acc.shape[-1]:
                lane = jax.lax.broadcasted_iota(jnp.int32, acc.shape, 1)
                acc = jnp.where(lane < n_classes, acc, -jnp.inf)
            m = jnp.max(acc, axis=-1, keepdims=True)
            e = jnp.exp(acc - m)                       # padded lanes -> 0
            denom = jnp.sum(e, axis=-1, keepdims=True)
            o_ref[...] = (e * pl.reciprocal(denom, approx=True)).astype(o_ref.dtype)


# ----------------------------------------------------------------------------
# Wrapper: padding (layout plumbing) + single pallas_call
# ----------------------------------------------------------------------------
@jax.jit
def seq_forward(x, params):
    B, d_in = x.shape
    n_layers = len(params)
    n_classes = params[-1][0].shape[1]

    d_pads = [_pad_feature(d_in)] + [_pad_feature(w.shape[1]) for (w, _) in params]
    max_dp = max(d_pads[1:])

    # --- batch tiling: multiple of 16 (bf16 packing), and >=2 tiles when the
    # batch permits so ("parallel",) shards across v7x's two TensorCores.
    bm = min(_round_up(B, BF16_SUBLANE), MAX_BATCH_TILE)
    b_pad = _round_up(B, bm)
    if b_pad // bm == 1 and b_pad >= 2 * BF16_SUBLANE:
        bm = _round_up(pl.cdiv(b_pad, 2), BF16_SUBLANE)
        b_pad = _round_up(B, bm)
    n_tiles = b_pad // bm

    # --- pad inputs / params (runs once in XLA, not per grid step).
    # Activation path is bf16 on HBM; weights bf16 (MXU); biases f32.
    x_p = jnp.pad(x, ((0, b_pad - B), (0, d_pads[0] - d_in))).astype(jnp.bfloat16)

    w_list = []
    bias_rows = []
    for i, (w, b) in enumerate(params):
        di, do = w.shape
        w_list.append(
            jnp.pad(w, ((0, d_pads[i] - di), (0, d_pads[i + 1] - do))).astype(jnp.bfloat16))
        bias_rows.append(jnp.pad(b.reshape(-1), (0, max_dp - do)).astype(jnp.float32))
    bias_all = jnp.stack(bias_rows, axis=0)          # (n_layers, max_dp) f32

    # --- specs: weights/biases VMEM-resident with a SINGLE buffer (constant
    # index_map, never re-fetched); only x / out tiles are double-buffered.
    resident = pl.Buffered(1)
    in_specs = [pl.BlockSpec((bm, d_pads[0]), lambda i: (i, 0))]
    for i in range(n_layers):
        in_specs.append(pl.BlockSpec((d_pads[i], d_pads[i + 1]), lambda i_: (0, 0),
                                     pipeline_mode=resident))
    in_specs.append(pl.BlockSpec((n_layers, max_dp), lambda i_: (0, 0),
                                 pipeline_mode=resident))
    out_specs = pl.BlockSpec((bm, d_pads[-1]), lambda i: (i, 0))

    # --- explicit VMEM budget (v7x: 64 MiB/TC, scoped default 32 MiB).
    weight_bytes = sum(d_pads[i] * d_pads[i + 1] * 2 for i in range(n_layers))  # bf16, 1 buf
    bias_bytes = n_layers * max_dp * 4                                          # f32, 1 buf
    io_bytes = 2 * bm * d_pads[0] * 2 + 2 * bm * d_pads[-1] * 2                 # 2-buffered bf16 tiles
    work_bytes = 2 * bm * max_dp * 4                                            # f32 working activations
    vmem_needed = weight_bytes + bias_bytes + io_bytes + work_bytes
    assert vmem_needed <= (48 << 20), (
        "Seq weights do not fit VMEM-resident on v7x; split the chain into two "
        "pallas_calls or tile the contraction dim (pltpu.emit_pipeline).")
    vmem_limit = int(min(max(2 * vmem_needed + (4 << 20), 16 << 20), 60 << 20))

    out = pl.pallas_call(
        functools.partial(_seq_fused_kernel, n_layers, n_classes, tuple(d_pads)),
        out_shape=jax.ShapeDtypeStruct((b_pad, d_pads[-1]), jnp.bfloat16),
        grid=(n_tiles,),
        in_specs=in_specs,
        out_specs=out_specs,
        compiler_params=pltpu.CompilerParams(
            dimension_semantics=("parallel",),   # batch axis shards across TCs (v7x)
            vmem_limit_bytes=vmem_limit,
        ),
    )(x_p, *w_list, bias_all)

    return out[:B, :n_classes]


# ----------------------------------------------------------------------------
# Parameter setup + pure-JAX reference (matches the kernel's bf16 matmul path)
# ----------------------------------------------------------------------------
def init_seq_params(key, dims):
    """dims = [d0, d1, ..., dn]; builds n linear layers deterministically."""
    params = []
    for i in range(len(dims) - 1):
        k_w, k_b, key = jax.random.split(key, 3)
        w = jax.random.normal(k_w, (dims[i], dims[i + 1]), jnp.float32) / jnp.sqrt(
            jnp.float32(dims[i]))
        b = jax.random.normal(k_b, (1, dims[i + 1]), jnp.float32) * 0.01
        params.append((w, b))
    return params


def seq_reference(x, params):
    h = x.astype(jnp.bfloat16)
    n = len(params)
    for i, (w, b) in enumerate(params):
        acc = jnp.dot(h, w.astype(jnp.bfloat16),
                      preferred_element_type=jnp.float32) + b.reshape(1, -1)
        if i < n - 1:
            h = jnp.maximum(acc, 0.0).astype(jnp.bfloat16)
        else:
            h = jax.nn.softmax(acc, axis=-1)
    return h


# TODO(synk): pretrained_model loading (torch.load/state_dict) and full_freeze
# (requires_grad=False) have no forward-pass effect and no Pallas equivalent.


if __name__ == "__main__":
    key = jax.random.PRNGKey(0)
    k_x, k_p = jax.random.split(key)

    batch = 8
    dims = [32, 64, 64, 16]  # in -> hidden -> hidden -> classes

    x = jax.random.normal(k_x, (batch, dims[0]), jnp.float32)
    params = tuple(init_seq_params(k_p, dims))

    out = jax.block_until_ready(seq_forward(x, params))
    out_f32 = out.astype(jnp.float32)

    assert out.shape == (batch, dims[-1])
    row_sums = jnp.sum(out_f32, axis=-1)
    assert jnp.allclose(row_sums, jnp.ones_like(row_sums), atol=1e-2)
    ref = seq_reference(x, params)
    assert jnp.allclose(out_f32, ref, atol=1e-2, rtol=5e-2)

    print("KERNEL_OK")
</pallas_src>

<mosaic_0001>
module attributes {stable_mosaic.version = 11 : i64} {
  func.func @_seq_fused_kernel(%arg0: i32, %arg1: memref<16x128xbf16, #tpu.memory_space<vmem>>, %arg2: memref<128x128xbf16, #tpu.memory_space<vmem>>, %arg3: memref<128x128xbf16, #tpu.memory_space<vmem>>, %arg4: memref<128x128xbf16, #tpu.memory_space<vmem>>, %arg5: memref<3x128xf32, #tpu.memory_space<vmem>>, %arg6: memref<16x128xbf16, #tpu.memory_space<vmem>>) attributes {dimension_semantics = [#tpu.dimension_semantics<parallel>], iteration_bounds = array<i64: 1>, scalar_prefetch = 0 : i64, scratch_operands = 0 : i64, tpu.core_type = #tpu.core_type<tc>, window_params = [{transform_indices = @transform_0, window_bounds = array<i64: 16, 128>}, {pipeline_mode = #tpu.pipeline_mode<synchronous>, transform_indices = @transform_1, window_bounds = array<i64: 128, 128>}, {pipeline_mode = #tpu.pipeline_mode<synchronous>, transform_indices = @transform_2, window_bounds = array<i64: 128, 128>}, {pipeline_mode = #tpu.pipeline_mode<synchronous>, transform_indices = @transform_3, window_bounds = array<i64: 128, 128>}, {pipeline_mode = #tpu.pipeline_mode<synchronous>, transform_indices = @transform_4, window_bounds = array<i64: 3, 128>}, {transform_indices = @transform_5, window_bounds = array<i64: 16, 128>}]} {
    %c0 = arith.constant 0 : index
    %c0_0 = arith.constant 0 : index
    %0 = vector.load %arg1[%c0, %c0_0] : memref<16x128xbf16, #tpu.memory_space<vmem>>, vector<16x128xbf16>
    %c0_1 = arith.constant 0 : index
    %c0_2 = arith.constant 0 : index
    %1 = vector.load %arg2[%c0_1, %c0_2] : memref<128x128xbf16, #tpu.memory_space<vmem>>, vector<128x128xbf16>
    %c0_3 = arith.constant 0 : index
    %c0_4 = arith.constant 0 : index
    %2 = vector.load %arg5[%c0_3, %c0_4] : memref<3x128xf32, #tpu.memory_space<vmem>>, vector<1x128xf32>
    %cst = arith.constant dense<0.000000e+00> : vector<16x128xf32>
    %3 = tpu.matmul %0, %1, %cst {dimension_numbers = #tpu.dot_dimension_numbers<[1], [0], [0], [1], [0, 0, 1, 1], [], []>} : vector<16x128xbf16>, vector<128x128xbf16>, vector<16x128xf32> -> vector<16x128xf32>
    %4 = vector.broadcast %2 : vector<1x128xf32> to vector<16x128xf32>
    %5 = arith.addf %3, %4 : vector<16x128xf32>
    %cst_5 = arith.constant 0.000000e+00 : f32
    %6 = vector.broadcast %cst_5 : f32 to vector<16x128xf32>
    %7 = arith.maximumf %5, %6 : vector<16x128xf32>
    %8 = arith.truncf %7 : vector<16x128xf32> to vector<16x128xbf16>
    %c0_6 = arith.constant 0 : index
    %c0_7 = arith.constant 0 : index
    %9 = vector.load %arg3[%c0_6, %c0_7] : memref<128x128xbf16, #tpu.memory_space<vmem>>, vector<128x128xbf16>
    %c1 = arith.constant 1 : index
    %c0_8 = arith.constant 0 : index
    %10 = vector.load %arg5[%c1, %c0_8] : memref<3x128xf32, #tpu.memory_space<vmem>>, vector<1x128xf32>
    %cst_9 = arith.constant dense<0.000000e+00> : vector<16x128xf32>
    %11 = tpu.matmul %8, %9, %cst_9 {dimension_numbers = #tpu.dot_dimension_numbers<[1], [0], [0], [1], [0, 0, 1, 1], [], []>} : vector<16x128xbf16>, vector<128x128xbf16>, vector<16x128xf32> -> vector<16x128xf32>
    %12 = vector.broadcast %10 : vector<1x128xf32> to vector<16x128xf32>
    %13 = arith.addf %11, %12 : vector<16x128xf32>
    %cst_10 = arith.constant 0.000000e+00 : f32
    %14 = vector.broadcast %cst_10 : f32 to vector<16x128xf32>
    %15 = arith.maximumf %13, %14 : vector<16x128xf32>
    %16 = arith.truncf %15 : vector<16x128xf32> to vector<16x128xbf16>
    %c0_11 = arith.constant 0 : index
    %c0_12 = arith.constant 0 : index
    %17 = vector.load %arg4[%c0_11, %c0_12] : memref<128x128xbf16, #tpu.memory_space<vmem>>, vector<128x128xbf16>
    %c2 = arith.constant 2 : index
    %c0_13 = arith.constant 0 : index
    %18 = vector.load %arg5[%c2, %c0_13] : memref<3x128xf32, #tpu.memory_space<vmem>>, vector<1x128xf32>
    %cst_14 = arith.constant dense<0.000000e+00> : vector<16x128xf32>
    %19 = tpu.matmul %16, %17, %cst_14 {dimension_numbers = #tpu.dot_dimension_numbers<[1], [0], [0], [1], [0, 0, 1, 1], [], []>} : vector<16x128xbf16>, vector<128x128xbf16>, vector<16x128xf32> -> vector<16x128xf32>
    %20 = vector.broadcast %18 : vector<1x128xf32> to vector<16x128xf32>
    %21 = arith.addf %19, %20 : vector<16x128xf32>
    %22 = tpu.iota {dimensions = array<i32: 1>} : vector<16x128xi32>
    %c16_i32 = arith.constant 16 : i32
    %23 = vector.broadcast %c16_i32 : i32 to vector<16x128xi32>
    %24 = arith.cmpi slt, %22, %23 : vector<16x128xi32>
    %cst_15 = arith.constant 0xFF800000 : f32
    %25 = vector.broadcast %cst_15 : f32 to vector<16x128xf32>
    %26 = arith.select %24, %21, %25 : vector<16x128xi1>, vector<16x128xf32>
    %cst_16 = arith.constant dense<0xFF800000> : vector<16xf32>
    %27 = vector.multi_reduction <maximumf>, %26, %cst_16 [1] : vector<16x128xf32> to vector<16xf32>
    %28 = vector.shape_cast %27 : vector<16xf32> to vector<16x1xf32>
    %29 = vector.broadcast %28 : vector<16x1xf32> to vector<16x128xf32>
    %30 = arith.subf %26, %29 : vector<16x128xf32>
    %31 = math.exp %30 : vector<16x128xf32>
    %cst_17 = arith.constant dense<0.000000e+00> : vector<16xf32>
    %32 = vector.multi_reduction <add>, %31, %cst_17 [1] : vector<16x128xf32> to vector<16xf32>
    %33 = vector.shape_cast %32 : vector<16xf32> to vector<16x1xf32>
    %34 = tpu.reciprocal %33 {approx = true} : vector<16x1xf32> -> vector<16x1xf32>
    %35 = vector.broadcast %34 : vector<16x1xf32> to vector<16x128xf32>
    %36 = arith.mulf %31, %35 : vector<16x128xf32>
    %37 = arith.truncf %36 : vector<16x128xf32> to vector<16x128xbf16>
    %c0_18 = arith.constant 0 : index
    %c0_19 = arith.constant 0 : index
    %38 = vector.load %arg6[%c0_18, %c0_19] : memref<16x128xbf16, #tpu.memory_space<vmem>>, vector<16x128xbf16>
    tpu.vector_store %arg6[%c0_18, %c0_19], %37 {strides = array<i32>} : memref<16x128xbf16, #tpu.memory_space<vmem>>, vector<16x128xbf16>,
    return
  }
  func.func @transform_0(%arg0: i32) -> (i32, i32) {
    %c0_i32 = arith.constant 0 : i32
    %c0_i32_0 = arith.constant 0 : i32
    return %arg0, %c0_i32 : i32, i32
  }
  func.func @transform_1(%arg0: i32) -> (i32, i32) {
    %c0_i32 = arith.constant 0 : i32
    %c0_i32_0 = arith.constant 0 : i32
    %c0_i32_1 = arith.constant 0 : i32
    return %c0_i32, %c0_i32_0 : i32, i32
  }
  func.func @transform_2(%arg0: i32) -> (i32, i32) {
    %c0_i32 = arith.constant 0 : i32
    %c0_i32_0 = arith.constant 0 : i32
    %c0_i32_1 = arith.constant 0 : i32
    return %c0_i32, %c0_i32_0 : i32, i32
  }
  func.func @transform_3(%arg0: i32) -> (i32, i32) {
    %c0_i32 = arith.constant 0 : i32
    %c0_i32_0 = arith.constant 0 : i32
    %c0_i32_1 = arith.constant 0 : i32
    return %c0_i32, %c0_i32_0 : i32, i32
  }
  func.func @transform_4(%arg0: i32) -> (i32, i32) {
    %c0_i32 = arith.constant 0 : i32
    %c0_i32_0 = arith.constant 0 : i32
    %c0_i32_1 = arith.constant 0 : i32
    return %c0_i32, %c0_i32_0 : i32, i32
  }
  func.func @transform_5(%arg0: i32) -> (i32, i32) {
    %c0_i32 = arith.constant 0 : i32
    %c0_i32_0 = arith.constant 0 : i32
    return %arg0, %c0_i32 : i32, i32
  }
}

</mosaic_0001>

<llo_original>
// kernel: seq_forward.1
$region0: #{seq_forward.1}
  #allocation0 [shape = 'u32[]', space=smem, size = 0x4, offset = 0x4, fixed_abs, tag = 'smem constant byte address 0x4 - core index']
  #allocation1 [shape = 'u32[72,128]{1,0:T(1,128)}', space=vmem, size = 0x9000, scoped, tag = 'internal scratch']
  %s0 = inlined_call_operand.vmem [shape: bf16[16,128], index: 0, kind: input, shape index: {}]
  %s1 = inlined_call_operand.vmem [shape: bf16[128,128], index: 1, kind: input, shape index: {}]
  %s2 = inlined_call_operand.vmem [shape: bf16[128,128], index: 2, kind: input, shape index: {}]
  %s3 = inlined_call_operand.vmem [shape: bf16[128,128], index: 3, kind: input, shape index: {}]
  %s4 = inlined_call_operand.vmem [shape: f32[3,128], index: 4, kind: input, shape index: {}]
  %s5 = inlined_call_operand.vmem [shape: bf16[16,128], index: 5, kind: output, shape index: {}]
  %s6 = sld [smem:[#allocation0]]
  $region30: #{seq_forward.1} parent=0
    _
  %s8 = ssub.s32 1, %s6
  %s9 = scalar_select 0, %s8, %s6
  // Predicated region
  $region2: #{seq_forward.1} parent=0 // pred_check
    _
  $region3: #{seq_forward.1} parent=0 // pred_check_branch
    %11 = sbr.rel (0) target = $region5
  $region4: #{seq_forward.1} parent=0 // pred_region
    _
  $region5: #{seq_forward.1} parent=0 // pred_fallthru
    _
  // Predicated region
  $region6: #{seq_forward.1} parent=0 // pred_check
    _
  $region7: #{seq_forward.1} parent=0 // pred_check_branch
    %13 = sbr.rel (0) target = $region9
  $region8: #{seq_forward.1} parent=0 // pred_region
    _
  $region9: #{seq_forward.1} parent=0 // pred_fallthru
    _
  // Predicated region
  $region10: #{seq_forward.1} parent=0 // pred_check
    _
  $region11: #{seq_forward.1} parent=0 // pred_check_branch
    %15 = sbr.rel (0) target = $region13
  $region12: #{seq_forward.1} parent=0 // pred_region
    _
  $region13: #{seq_forward.1} parent=0 // pred_fallthru
    _
  // Predicated region
  $region14: #{seq_forward.1} parent=0 // pred_check
    _
  $region15: #{seq_forward.1} parent=0 // pred_check_branch
    %17 = sbr.rel (0) target = $region17
  $region16: #{seq_forward.1} parent=0 // pred_region
    _
  $region17: #{seq_forward.1} parent=0 // pred_fallthru
    _
  // Predicated region
  $region18: #{seq_forward.1} parent=0 // pred_check
    _
  $region19: #{seq_forward.1} parent=0 // pred_check_branch
    %19 = sbr.rel (0) target = $region21
  $region20: #{seq_forward.1} parent=0 // pred_region
    _
  $region21: #{seq_forward.1} parent=0 // pred_fallthru
    _
  %v20 = vld [vmem:[%s0] sm:$0xf]
  %v21 = vld [vmem:[%s0 + $0x4] sm:$0xf]
  %v22 = vld [vmem:[%s1] sm:$0xf]
  %v23 = vld [vmem:[%s1 + $0x4] sm:$0xf]
  %v24 = vld [vmem:[%s1 + $0x8] sm:$0xf]
  %v25 = vld [vmem:[%s1 + $0xc] sm:$0xf]
  %v26 = vld [vmem:[%s1 + $0x10] sm:$0xf]
  %v27 = vld [vmem:[%s1 + $0x14] sm:$0xf]
  %v28 = vld [vmem:[%s1 + $0x18] sm:$0xf]
  %v29 = vld [vmem:[%s1 + $0x1c] sm:$0xf]
  %v30 = vld [vmem:[%s1 + $0x20] sm:$0xf]
  %v31 = vld [vmem:[%s1 + $0x24] sm:$0xf]
  %v32 = vld [vmem:[%s1 + $0x28] sm:$0xf]
  %v33 = vld [vmem:[%s1 + $0x2c] sm:$0xf]
  %v34 = vld [vmem:[%s1 + $0x30] sm:$0xf]
  %v35 = vld [vmem:[%s1 + $0x34] sm:$0xf]
  %v36 = vld [vmem:[%s1 + $0x38] sm:$0xf]
  %v37 = vld [vmem:[%s1 + $0x3c] sm:$0xf]
  %v38 = vld [vmem:[%s4] sm:$0x1]
  %v39 = vperm.slane %v38, 0
  %v42 = vunpack.c.l.b16 %v20
  %v43 = vunpack.c.l.b16 %v21
  %v44 = vpack.c.b16 %v43, %v42
  %v62 = vunpack.c.l.b16 %v22
  %v63 = vunpack.c.l.b16 %v23
  %v64 = vunpack.c.l.b16 %v24
  %v65 = vunpack.c.l.b16 %v25
  %v66 = vunpack.c.l.b16 %v26
  %v67 = vunpack.c.l.b16 %v27
  %v68 = vunpack.c.l.b16 %v28
  %v69 = vunpack.c.l.b16 %v29
  %v70 = vunpack.c.l.b16 %v30
  %v71 = vunpack.c.l.b16 %v31
  %v72 = vunpack.c.l.b16 %v32
  %v73 = vunpack.c.l.b16 %v33
  %v74 = vunpack.c.l.b16 %v34
  %v75 = vunpack.c.l.b16 %v35
  %v76 = vunpack.c.l.b16 %v36
  %v77 = vunpack.c.l.b16 %v37
  %v78 = vpack.c.b16 %v63, %v62
  %v79 = vpack.c.b16 %v65, %v64
  %v80 = vpack.c.b16 %v67, %v66
  %v81 = vpack.c.b16 %v69, %v68
  %v82 = vpack.c.b16 %v71, %v70
  %v83 = vpack.c.b16 %v73, %v72
  %v84 = vpack.c.b16 %v75, %v74
  %v85 = vpack.c.b16 %v77, %v76
  %94 = vmatpush.bf16.msra.mxu0 %v85
  %95 = vmatpush.bf16.msra.mxu0 %v84
  %96 = vmatpush.bf16.msra.mxu0 %v83
  %97 = vmatpush.bf16.msra.mxu0 %v82
  %98 = vmatpush.bf16.msra.mxu0 %v81
  %99 = vmatpush.bf16.msra.mxu0 %v80
  %100 = vmatpush.bf16.msra.mxu0 %v79
  %101 = vmatpush.bf16.msra.mxu0 %v78
  %102 = vmatmul.bf16.gmra.mxu0 %v44
  %v103 = vpop.f32.mrf.mxu0
  %v104 = vadd.f32 %v39, %v103
  %v105 = vpop.f32.mrf.mxu0
  %v106 = vadd.f32 %v39, %v105
  %107 = vdwg.mxu0
  %v108 = vmax.f32 %v104, 0.0
  %v109 = vmax.f32 %v106, 0.0
  %v110 = vpack.c.bf16 %v109, %v108
  %v111 = vld [vmem:[%s2] sm:$0xf]
  %v112 = vld [vmem:[%s2 + $0x4] sm:$0xf]
  %v113 = vld [vmem:[%s2 + $0x8] sm:$0xf]
  %v114 = vld [vmem:[%s2 + $0xc] sm:$0xf]
  %v115 = vld [vmem:[%s2 + $0x10] sm:$0xf]
  %v116 = vld [vmem:[%s2 + $0x14] sm:$0xf]
  %v117 = vld [vmem:[%s2 + $0x18] sm:$0xf]
  %v118 = vld [vmem:[%s2 + $0x1c] sm:$0xf]
  %v119 = vld [vmem:[%s2 + $0x20] sm:$0xf]
  %v120 = vld [vmem:[%s2 + $0x24] sm:$0xf]
  %v121 = vld [vmem:[%s2 + $0x28] sm:$0xf]
  %v122 = vld [vmem:[%s2 + $0x2c] sm:$0xf]
  %v123 = vld [vmem:[%s2 + $0x30] sm:$0xf]
  %v124 = vld [vmem:[%s2 + $0x34] sm:$0xf]
  %v125 = vld [vmem:[%s2 + $0x38] sm:$0xf]
  %v126 = vld [vmem:[%s2 + $0x3c] sm:$0xf]
  %v127 = vld [vmem:[%s4 + $0x1] sm:$0x1]
  %v128 = vperm.slane %v127, 0
  %v145 = vunpack.c.l.b16 %v111
  %v146 = vunpack.c.l.b16 %v112
  %v147 = vunpack.c.l.b16 %v113
  %v148 = vunpack.c.l.b16 %v114
  %v149 = vunpack.c.l.b16 %v115
  %v150 = vunpack.c.l.b16 %v116
  %v151 = vunpack.c.l.b16 %v117
  %v152 = vunpack.c.l.b16 %v118
  %v153 = vunpack.c.l.b16 %v119
  %v154 = vunpack.c.l.b16 %v120
  %v155 = vunpack.c.l.b16 %v121
  %v156 = vunpack.c.l.b16 %v122
  %v157 = vunpack.c.l.b16 %v123
  %v158 = vunpack.c.l.b16 %v124
  %v159 = vunpack.c.l.b16 %v125
  %v160 = vunpack.c.l.b16 %v126
  %v161 = vpack.c.b16 %v146, %v145
  %v162 = vpack.c.b16 %v148, %v147
  %v163 = vpack.c.b16 %v150, %v149
  %v164 = vpack.c.b16 %v152, %v151
  %v165 = vpack.c.b16 %v154, %v153
  %v166 = vpack.c.b16 %v156, %v155
  %v167 = vpack.c.b16 %v158, %v157
  %v168 = vpack.c.b16 %v160, %v159
  %177 = vmatpush.bf16.msra.mxu0 %v168
  %178 = vmatpush.bf16.msra.mxu0 %v167
  %179 = vmatpush.bf16.msra.mxu0 %v166
  %180 = vmatpush.bf16.msra.mxu0 %v165
  %181 = vmatpush.bf16.msra.mxu0 %v164
  %182 = vmatpush.bf16.msra.mxu0 %v163
  %183 = vmatpush.bf16.msra.mxu0 %v162
  %184 = vmatpush.bf16.msra.mxu0 %v161
  %185 = vmatmul.bf16.gmra.mxu0 %v110
  %v186 = vpop.f32.mrf.mxu0
  %v187 = vadd.f32 %v128, %v186
  %v188 = vpop.f32.mrf.mxu0
  %v189 = vadd.f32 %v128, %v188
  %190 = vdwg.mxu0
  %v191 = vmax.f32 %v187, 0.0
  %v192 = vmax.f32 %v189, 0.0
  %v193 = vpack.c.bf16 %v192, %v191
  %v194 = vld [vmem:[%s3] sm:$0xf]
  %v195 = vld [vmem:[%s3 + $0x4] sm:$0xf]
  %v196 = vld [vmem:[%s3 + $0x8] sm:$0xf]
  %v197 = vld [vmem:[%s3 + $0xc] sm:$0xf]
  %v198 = vld [vmem:[%s3 + $0x10] sm:$0xf]
  %v199 = vld [vmem:[%s3 + $0x14] sm:$0xf]
  %v200 = vld [vmem:[%s3 + $0x18] sm:$0xf]
  %v201 = vld [vmem:[%s3 + $0x1c] sm:$0xf]
  %v202 = vld [vmem:[%s3 + $0x20] sm:$0xf]
  %v203 = vld [vmem:[%s3 + $0x24] sm:$0xf]
  %v204 = vld [vmem:[%s3 + $0x28] sm:$0xf]
  %v205 = vld [vmem:[%s3 + $0x2c] sm:$0xf]
  %v206 = vld [vmem:[%s3 + $0x30] sm:$0xf]
  %v207 = vld [vmem:[%s3 + $0x34] sm:$0xf]
  %v208 = vld [vmem:[%s3 + $0x38] sm:$0xf]
  %v209 = vld [vmem:[%s3 + $0x3c] sm:$0xf]
  %v210 = vld [vmem:[%s4 + $0x2] sm:$0x1]
  %v211 = vperm.slane %v210, 0
  %v228 = vunpack.c.l.b16 %v194
  %v229 = vunpack.c.l.b16 %v195
  %v230 = vunpack.c.l.b16 %v196
  %v231 = vunpack.c.l.b16 %v197
  %v232 = vunpack.c.l.b16 %v198
  %v233 = vunpack.c.l.b16 %v199
  %v234 = vunpack.c.l.b16 %v200
  %v235 = vunpack.c.l.b16 %v201
  %v236 = vunpack.c.l.b16 %v202
  %v237 = vunpack.c.l.b16 %v203
  %v238 = vunpack.c.l.b16 %v204
  %v239 = vunpack.c.l.b16 %v205
  %v240 = vunpack.c.l.b16 %v206
  %v241 = vunpack.c.l.b16 %v207
  %v242 = vunpack.c.l.b16 %v208
  %v243 = vunpack.c.l.b16 %v209
  %v244 = vpack.c.b16 %v229, %v228
  %v245 = vpack.c.b16 %v231, %v230
  %v246 = vpack.c.b16 %v233, %v232
  %v247 = vpack.c.b16 %v235, %v234
  %v248 = vpack.c.b16 %v237, %v236
  %v249 = vpack.c.b16 %v239, %v238
  %v250 = vpack.c.b16 %v241, %v240
  %v251 = vpack.c.b16 %v243, %v242
  %260 = vmatpush.bf16.msra.mxu0 %v251
  %261 = vmatpush.bf16.msra.mxu0 %v250
  %262 = vmatpush.bf16.msra.mxu0 %v249
  %263 = vmatpush.bf16.msra.mxu0 %v248
  %264 = vmatpush.bf16.msra.mxu0 %v247
  %265 = vmatpush.bf16.msra.mxu0 %v246
  %266 = vmatpush.bf16.msra.mxu0 %v245
  %267 = vmatpush.bf16.msra.mxu0 %v244
  %268 = vmatmul.bf16.gmra.mxu0 %v193
  %v269 = vpop.f32.mrf.mxu0
  %v270 = vadd.f32 %v211, %v269
  %v271 = vpop.f32.mrf.mxu0
  %v272 = vadd.f32 %v211, %v271
  %273 = vdwg.mxu0
  %v274 = vlaneseq
  %v275 = vand.u32 %v274, 127
  %vm276 = vcmp.lt.s32.totalorder %v275, 16
  %v277 = vsel %vm276, %v270, -inf
  %v278 = vsel %vm276, %v272, -inf
  %279 = vmax.xlane.f32.xlu0 %v277
  %v280 = vpop.xlane.xlu0 %279
  %281 = vmax.xlane.f32.xlu0 %v278
  %v282 = vpop.xlane.xlu0 %281
  %v283 = vsub.f32 %v277, %v280
  %v284 = vsub.f32 %v278, %v282
  %v285 = vmul.f32 %v283, 1.442695
  %v286 = vpow.pop %v285
  %v287 = vmul.f32 %v284, 1.442695
  %v288 = vpow.pop %v287
  %289 = vadd.xlane.f32.xlu0 %v286
  %v290 = vpop.xlane.xlu0 %289
  %291 = vadd.xlane.f32.xlu0 %v288
  %v292 = vpop.xlane.xlu0 %291
  %v293 = vrcp.pop %v290
  %v294 = vrcp.pop %v292
  %v295 = vmul.f32 %v286, %v293
  %v296 = vmul.f32 %v288, %v294
  %v297 = vpack.c.bf16 %v295, %v295
  %v298 = vpack.c.bf16 %v296, %v296
  %299 = vst [vmem:[%s5] sm:$0xf] %v297
  %300 = vst [vmem:[%s5 + $0x4] sm:$0xf] %v298
  // Predicated region
  $region22: #{seq_forward.1} parent=0 // pred_check
    _
  $region23: #{seq_forward.1} parent=0 // pred_check_branch
    %302 = sbr.rel (0) target = $region25
  $region24: #{seq_forward.1} parent=0 // pred_region
    _
  $region25: #{seq_forward.1} parent=0 // pred_fallthru
    _
  // Predicated region
  $region26: #{seq_forward.1} parent=0 // pred_check
    _
  $region27: #{seq_forward.1} parent=0 // pred_check_branch
    %304 = sbr.rel (0) target = $region29
  $region28: #{seq_forward.1} parent=0 // pred_region
    _
  $region29: #{seq_forward.1} parent=0 // pred_fallthru
    _

</llo_original>
